<compile_context>
chip_gen: v5e
topology: v5e:2x2
jax: 0.10.0
libtpu: 0.0.40
codegen_flags: <defaults>
</compile_context>

<pallas_src>
import functools

import jax
import jax.numpy as jnp
from jax import lax
from jax.experimental import pallas as pl
from jax.experimental.pallas import tpu as pltpu

LN_EPS = 1e-12  # BERT-style LayerNorm epsilon
_INV_SQRT2 = 0.7071067811865476


def _round_up(x, m):
    return (x + m - 1) // m * m


def _mlp_kernel(x_ref, w1_ref, b1_ref, gamma_ref, beta_ref, w2_ref, b2_ref,
                o_ref, *, hidden_true):
    # ---- Linear 1 (MXU): native-dtype operands, f32 accumulate ----
    h = jnp.dot(x_ref[...], w1_ref[...], preferred_element_type=jnp.float32)
    h = h + b1_ref[...].astype(jnp.float32)

    # ---- exact (erf) GELU ----
    h = 0.5 * h * (1.0 + lax.erf(h * _INV_SQRT2))

    # ---- LayerNorm over the true hidden columns ----
    # Padded hidden columns of h are exactly zero (w1/b1 padded with zeros and
    # gelu(0)=0), so the plain sum is already correct; divide by the true size.
    hidden_pad = h.shape[-1]
    inv_h = 1.0 / hidden_true
    mu = jnp.sum(h, axis=-1, keepdims=True) * inv_h
    diff = h - mu
    if hidden_pad != hidden_true:
        # Zero the padded columns so they neither contribute to the variance
        # nor produce non-zero normalized values (gamma/beta pads are 0 too).
        col = lax.broadcasted_iota(jnp.int32, h.shape, dimension=1)
        diff = jnp.where(col < hidden_true, diff, 0.0)
    var = jnp.sum(diff * diff, axis=-1, keepdims=True) * inv_h
    hn = diff * lax.rsqrt(var + LN_EPS)
    hn = hn * gamma_ref[...].astype(jnp.float32) + beta_ref[...].astype(jnp.float32)

    # ---- Linear 2 (MXU): cast activations to weight dtype (no-op for f32) ----
    out = jnp.dot(hn.astype(w2_ref.dtype), w2_ref[...],
                  preferred_element_type=jnp.float32)
    out = out + b2_ref[...].astype(jnp.float32)

    o_ref[...] = out.astype(o_ref.dtype)


def mlp_pallas(x, w1, b1, gamma, beta, w2, b2, *, tile_rows=256,
               vmem_limit_bytes=None):
    """x: (N, input_dim) -> (N, output_dim). Fused MLP forward."""
    n, input_dim = x.shape
    hidden_dim = w1.shape[1]
    output_dim = w2.shape[1]

    # Lane-align feature dims (128) so vregs/MXU are fully used and the output
    # store is dense; sublane-align / tile the row dim.
    in_p = _round_up(input_dim, 128)
    hid_p = _round_up(hidden_dim, 128)
    out_p = _round_up(output_dim, 128)

    # Adaptive row tile: large for throughput, but don't over-pad tiny inputs.
    tile_rows = max(8, min(tile_rows, _round_up(n, 8)))
    n_p = _round_up(n, tile_rows)
    grid = (n_p // tile_rows,)

    def pad2(a, r, c):
        a = a.reshape(-1, a.shape[-1]) if a.ndim == 2 else a.reshape(1, -1)
        if a.shape == (r, c):
            return a  # avoid no-op pad copies on already-aligned shapes
        return jnp.pad(a, ((0, r - a.shape[0]), (0, c - a.shape[1])))

    x_p = pad2(x, n_p, in_p)
    w1_p = pad2(w1, in_p, hid_p)
    b1_p = pad2(b1, 1, hid_p)
    g_p = pad2(gamma, 1, hid_p)
    be_p = pad2(beta, 1, hid_p)
    w2_p = pad2(w2, hid_p, out_p)
    b2_p = pad2(b2, 1, out_p)

    # ---- explicit VMEM budget (double-buffered blocks + f32 intermediates) ----
    if vmem_limit_bytes is None:
        eb = lambda a: a.dtype.itemsize
        buffered = 2 * (tile_rows * in_p * eb(x_p)
                        + in_p * hid_p * eb(w1_p)
                        + hid_p * out_p * eb(w2_p)
                        + 3 * hid_p * eb(b1_p) + out_p * eb(b2_p)
                        + tile_rows * out_p * eb(x_p))
        scratch = 4 * tile_rows * (2 * hid_p + out_p)  # f32 h / hn / out live values
        need = int(1.25 * (buffered + scratch)) + (4 << 20)
        try:
            phys = pltpu.get_tpu_info().vmem_capacity_bytes  # 64 MiB/TC on v7x, 128 on v5e/v6e
        except Exception:
            phys = 64 << 20  # conservative (v7x) fallback
        vmem_limit_bytes = int(min(max(need, 32 << 20), phys - (8 << 20)))

    cost = pl.CostEstimate(
        flops=2 * n_p * (in_p * hid_p + hid_p * out_p),
        transcendentals=n_p * hid_p,
        bytes_accessed=(x_p.size * x_p.dtype.itemsize
                        + w1_p.size * w1_p.dtype.itemsize
                        + w2_p.size * w2_p.dtype.itemsize
                        + n_p * out_p * x.dtype.itemsize),
    )

    # Parameters are replicated (resident) across all row-tiles.
    full = lambda shape: pl.BlockSpec(shape, lambda i: (0, 0))

    out = pl.pallas_call(
        functools.partial(_mlp_kernel, hidden_true=hidden_dim),
        out_shape=jax.ShapeDtypeStruct((n_p, out_p), x.dtype),
        grid_spec=pltpu.PrefetchScalarGridSpec(
            num_scalar_prefetch=0,
            grid=grid,
            in_specs=[
                pl.BlockSpec((tile_rows, in_p), lambda i: (i, 0)),  # x
                full((in_p, hid_p)),                                # w1
                full((1, hid_p)),                                   # b1
                full((1, hid_p)),                                   # gamma
                full((1, hid_p)),                                   # beta
                full((hid_p, out_p)),                               # w2
                full((1, out_p)),                                   # b2
            ],
            out_specs=pl.BlockSpec((tile_rows, out_p), lambda i: (i, 0)),
        ),
        compiler_params=pltpu.CompilerParams(
            dimension_semantics=("parallel",),
            vmem_limit_bytes=vmem_limit_bytes),
        cost_estimate=cost,
    )(x_p, w1_p, b1_p, g_p, be_p, w2_p, b2_p)

    if n_p != n or out_p != output_dim:
        out = out[:n, :output_dim]
    return out


def mlp_reference(x, w1, b1, gamma, beta, w2, b2):
    h = x.astype(jnp.float32) @ w1.astype(jnp.float32) + b1
    h = 0.5 * h * (1.0 + lax.erf(h / jnp.sqrt(2.0)))
    mu = jnp.mean(h, axis=-1, keepdims=True)
    var = jnp.mean(jnp.square(h - mu), axis=-1, keepdims=True)
    h = (h - mu) * lax.rsqrt(var + LN_EPS)
    h = h * gamma + beta
    return (h @ w2.astype(jnp.float32) + b2).astype(x.dtype)


if __name__ == "__main__":
    # Small shapes consistent with the module: tokens = batch*seq rows.
    batch, seq = 2, 8
    input_dim, hidden_dim, output_dim = 32, 64, 32
    n_rows = batch * seq

    key = jax.random.PRNGKey(0)
    kx, kw1, kb1, kw2, kb2 = jax.random.split(key, 5)

    x = jax.random.normal(kx, (batch, seq, input_dim), dtype=jnp.float32)

    # Deterministic parameter init (synthetic; shapes match nn.Linear/LayerNorm).
    w1 = jax.random.normal(kw1, (input_dim, hidden_dim), jnp.float32) * 0.05
    b1 = jax.random.normal(kb1, (1, hidden_dim), jnp.float32) * 0.01
    gamma = jnp.ones((1, hidden_dim), jnp.float32)
    beta = jnp.zeros((1, hidden_dim), jnp.float32)
    w2 = jax.random.normal(kw2, (hidden_dim, output_dim), jnp.float32) * 0.05
    b2 = jax.random.normal(kb2, (1, output_dim), jnp.float32) * 0.01

    x2d = x.reshape(n_rows, input_dim)

    out = mlp_pallas(x2d, w1, b1, gamma, beta, w2, b2)
    out = jax.block_until_ready(out)
    out = out.reshape(batch, seq, output_dim)

    ref = mlp_reference(x2d, w1, b1, gamma, beta, w2, b2).reshape(
        batch, seq, output_dim)

    assert out.shape == (batch, seq, output_dim)
    assert jnp.allclose(out, ref, atol=2e-5, rtol=1e-5), "mismatch vs reference"
    print("KERNEL_OK")
</pallas_src>

<mosaic_0001>
module attributes {stable_mosaic.version = 11 : i64} {
  func.func @_mlp_kernel(%arg0: i32, %arg1: memref<16x128xf32, #tpu.memory_space<vmem>>, %arg2: memref<128x128xf32, #tpu.memory_space<vmem>>, %arg3: memref<1x128xf32, #tpu.memory_space<vmem>>, %arg4: memref<1x128xf32, #tpu.memory_space<vmem>>, %arg5: memref<1x128xf32, #tpu.memory_space<vmem>>, %arg6: memref<128x128xf32, #tpu.memory_space<vmem>>, %arg7: memref<1x128xf32, #tpu.memory_space<vmem>>, %arg8: memref<16x128xf32, #tpu.memory_space<vmem>>) attributes {dimension_semantics = [#tpu.dimension_semantics<parallel>], iteration_bounds = array<i64: 1>, scalar_prefetch = 0 : i64, scratch_operands = 0 : i64, tpu.core_type = #tpu.core_type<tc>, window_params = [{transform_indices = @transform_0, window_bounds = array<i64: 16, 128>}, {pipeline_mode = #tpu.pipeline_mode<synchronous>, transform_indices = @transform_1, window_bounds = array<i64: 128, 128>}, {pipeline_mode = #tpu.pipeline_mode<synchronous>, transform_indices = @transform_2, window_bounds = array<i64: 1, 128>}, {pipeline_mode = #tpu.pipeline_mode<synchronous>, transform_indices = @transform_3, window_bounds = array<i64: 1, 128>}, {pipeline_mode = #tpu.pipeline_mode<synchronous>, transform_indices = @transform_4, window_bounds = array<i64: 1, 128>}, {pipeline_mode = #tpu.pipeline_mode<synchronous>, transform_indices = @transform_5, window_bounds = array<i64: 128, 128>}, {pipeline_mode = #tpu.pipeline_mode<synchronous>, transform_indices = @transform_6, window_bounds = array<i64: 1, 128>}, {transform_indices = @transform_7, window_bounds = array<i64: 16, 128>}]} {
    %c0 = arith.constant 0 : index
    %c0_0 = arith.constant 0 : index
    %0 = vector.load %arg1[%c0, %c0_0] : memref<16x128xf32, #tpu.memory_space<vmem>>, vector<16x128xf32>
    %c0_1 = arith.constant 0 : index
    %c0_2 = arith.constant 0 : index
    %1 = vector.load %arg2[%c0_1, %c0_2] : memref<128x128xf32, #tpu.memory_space<vmem>>, vector<128x128xf32>
    %cst = arith.constant dense<0.000000e+00> : vector<16x128xf32>
    %2 = tpu.matmul %0, %1, %cst {dimension_numbers = #tpu.dot_dimension_numbers<[1], [0], [0], [1], [0, 0, 1, 1], [], []>} : vector<16x128xf32>, vector<128x128xf32>, vector<16x128xf32> -> vector<16x128xf32>
    %c0_3 = arith.constant 0 : index
    %c0_4 = arith.constant 0 : index
    %3 = vector.load %arg3[%c0_3, %c0_4] : memref<1x128xf32, #tpu.memory_space<vmem>>, vector<1x128xf32>
    %4 = vector.broadcast %3 : vector<1x128xf32> to vector<16x128xf32>
    %5 = arith.addf %2, %4 : vector<16x128xf32>
    %cst_5 = arith.constant 5.000000e-01 : f32
    %6 = vector.broadcast %cst_5 : f32 to vector<16x128xf32>
    %7 = arith.mulf %6, %5 : vector<16x128xf32>
    %cst_6 = arith.constant 0.707106769 : f32
    %8 = vector.broadcast %cst_6 : f32 to vector<16x128xf32>
    %9 = arith.mulf %5, %8 : vector<16x128xf32>
    %10 = math.erf %9 : vector<16x128xf32>
    %cst_7 = arith.constant 1.000000e+00 : f32
    %11 = vector.broadcast %cst_7 : f32 to vector<16x128xf32>
    %12 = arith.addf %11, %10 : vector<16x128xf32>
    %13 = arith.mulf %7, %12 : vector<16x128xf32>
    %cst_8 = arith.constant dense<0.000000e+00> : vector<16xf32>
    %14 = vector.multi_reduction <add>, %13, %cst_8 [1] : vector<16x128xf32> to vector<16xf32>
    %15 = vector.shape_cast %14 : vector<16xf32> to vector<16x1xf32>
    %cst_9 = arith.constant 1.562500e-02 : f32
    %16 = vector.broadcast %cst_9 : f32 to vector<16x1xf32>
    %17 = arith.mulf %15, %16 : vector<16x1xf32>
    %18 = vector.broadcast %17 : vector<16x1xf32> to vector<16x128xf32>
    %19 = arith.subf %13, %18 : vector<16x128xf32>
    %20 = tpu.iota {dimensions = array<i32: 1>} : vector<16x128xi32>
    %c64_i32 = arith.constant 64 : i32
    %21 = vector.broadcast %c64_i32 : i32 to vector<16x128xi32>
    %22 = arith.cmpi slt, %20, %21 : vector<16x128xi32>
    %cst_10 = arith.constant 0.000000e+00 : f32
    %23 = vector.broadcast %cst_10 : f32 to vector<16x128xf32>
    %24 = arith.select %22, %19, %23 : vector<16x128xi1>, vector<16x128xf32>
    %25 = arith.mulf %24, %24 : vector<16x128xf32>
    %cst_11 = arith.constant dense<0.000000e+00> : vector<16xf32>
    %26 = vector.multi_reduction <add>, %25, %cst_11 [1] : vector<16x128xf32> to vector<16xf32>
    %27 = vector.shape_cast %26 : vector<16xf32> to vector<16x1xf32>
    %cst_12 = arith.constant 1.562500e-02 : f32
    %28 = vector.broadcast %cst_12 : f32 to vector<16x1xf32>
    %29 = arith.mulf %27, %28 : vector<16x1xf32>
    %cst_13 = arith.constant 9.99999996E-13 : f32
    %30 = vector.broadcast %cst_13 : f32 to vector<16x1xf32>
    %31 = arith.addf %29, %30 : vector<16x1xf32>
    %32 = math.rsqrt %31 : vector<16x1xf32>
    %33 = vector.broadcast %32 : vector<16x1xf32> to vector<16x128xf32>
    %34 = arith.mulf %24, %33 : vector<16x128xf32>
    %c0_14 = arith.constant 0 : index
    %c0_15 = arith.constant 0 : index
    %35 = vector.load %arg4[%c0_14, %c0_15] : memref<1x128xf32, #tpu.memory_space<vmem>>, vector<1x128xf32>
    %36 = vector.broadcast %35 : vector<1x128xf32> to vector<16x128xf32>
    %37 = arith.mulf %34, %36 : vector<16x128xf32>
    %c0_16 = arith.constant 0 : index
    %c0_17 = arith.constant 0 : index
    %38 = vector.load %arg5[%c0_16, %c0_17] : memref<1x128xf32, #tpu.memory_space<vmem>>, vector<1x128xf32>
    %39 = vector.broadcast %38 : vector<1x128xf32> to vector<16x128xf32>
    %40 = arith.addf %37, %39 : vector<16x128xf32>
    %c0_18 = arith.constant 0 : index
    %c0_19 = arith.constant 0 : index
    %41 = vector.load %arg6[%c0_18, %c0_19] : memref<128x128xf32, #tpu.memory_space<vmem>>, vector<128x128xf32>
    %cst_20 = arith.constant dense<0.000000e+00> : vector<16x128xf32>
    %42 = tpu.matmul %40, %41, %cst_20 {dimension_numbers = #tpu.dot_dimension_numbers<[1], [0], [0], [1], [0, 0, 1, 1], [], []>} : vector<16x128xf32>, vector<128x128xf32>, vector<16x128xf32> -> vector<16x128xf32>
    %c0_21 = arith.constant 0 : index
    %c0_22 = arith.constant 0 : index
    %43 = vector.load %arg7[%c0_21, %c0_22] : memref<1x128xf32, #tpu.memory_space<vmem>>, vector<1x128xf32>
    %44 = vector.broadcast %43 : vector<1x128xf32> to vector<16x128xf32>
    %45 = arith.addf %42, %44 : vector<16x128xf32>
    %c0_23 = arith.constant 0 : index
    %c0_24 = arith.constant 0 : index
    %46 = vector.load %arg8[%c0_23, %c0_24] : memref<16x128xf32, #tpu.memory_space<vmem>>, vector<16x128xf32>
    tpu.vector_store %arg8[%c0_23, %c0_24], %45 {strides = array<i32>} : memref<16x128xf32, #tpu.memory_space<vmem>>, vector<16x128xf32>,
    return
  }
  func.func @transform_0(%arg0: i32) -> (i32, i32) {
    %c0_i32 = arith.constant 0 : i32
    %c0_i32_0 = arith.constant 0 : i32
    return %arg0, %c0_i32 : i32, i32
  }
  func.func @transform_1(%arg0: i32) -> (i32, i32) {
    %c0_i32 = arith.constant 0 : i32
    %c0_i32_0 = arith.constant 0 : i32
    %c0_i32_1 = arith.constant 0 : i32
    return %c0_i32, %c0_i32_0 : i32, i32
  }
  func.func @transform_2(%arg0: i32) -> (i32, i32) {
    %c0_i32 = arith.constant 0 : i32
    %c0_i32_0 = arith.constant 0 : i32
    %c0_i32_1 = arith.constant 0 : i32
    return %c0_i32, %c0_i32_0 : i32, i32
  }
  func.func @transform_3(%arg0: i32) -> (i32, i32) {
    %c0_i32 = arith.constant 0 : i32
    %c0_i32_0 = arith.constant 0 : i32
    %c0_i32_1 = arith.constant 0 : i32
    return %c0_i32, %c0_i32_0 : i32, i32
  }
  func.func @transform_4(%arg0: i32) -> (i32, i32) {
    %c0_i32 = arith.constant 0 : i32
    %c0_i32_0 = arith.constant 0 : i32
    %c0_i32_1 = arith.constant 0 : i32
    return %c0_i32, %c0_i32_0 : i32, i32
  }
  func.func @transform_5(%arg0: i32) -> (i32, i32) {
    %c0_i32 = arith.constant 0 : i32
    %c0_i32_0 = arith.constant 0 : i32
    %c0_i32_1 = arith.constant 0 : i32
    return %c0_i32, %c0_i32_0 : i32, i32
  }
  func.func @transform_6(%arg0: i32) -> (i32, i32) {
    %c0_i32 = arith.constant 0 : i32
    %c0_i32_0 = arith.constant 0 : i32
    %c0_i32_1 = arith.constant 0 : i32
    return %c0_i32, %c0_i32_0 : i32, i32
  }
  func.func @transform_7(%arg0: i32) -> (i32, i32) {
    %c0_i32 = arith.constant 0 : i32
    %c0_i32_0 = arith.constant 0 : i32
    return %arg0, %c0_i32 : i32, i32
  }
}

</mosaic_0001>

<llo_original>
// kernel: tpu_custom_call.1
$region0: #{tpu_custom_call.1}
  #allocation0 [shape = 'u32[]', space=smem, size = 0x4, offset = 0x4, fixed_abs, tag = 'smem constant byte address 0x4 - core index']
  #allocation1 [shape = 'u32[72,128]{1,0:T(1,128)}', space=vmem, size = 0x9000, scoped, tag = 'internal scratch']
  %s0 = inlined_call_operand.hbm [shape: f32[16,128], index: 0, kind: input, shape index: {}]
  %s1 = inlined_call_operand.hbm [shape: f32[128,128], index: 1, kind: input, shape index: {}]
  %s2 = inlined_call_operand.vmem [shape: f32[1,128], index: 2, kind: input, shape index: {}]
  %s3 = inlined_call_operand.vmem [shape: f32[1,128], index: 3, kind: input, shape index: {}]
  %s4 = inlined_call_operand.vmem [shape: f32[1,128], index: 4, kind: input, shape index: {}]
  %s5 = inlined_call_operand.hbm [shape: f32[128,128], index: 5, kind: input, shape index: {}]
  %s6 = inlined_call_operand.vmem [shape: f32[1,128], index: 6, kind: input, shape index: {}]
  %s7 = inlined_call_operand.hbm [shape: f32[16,128], index: 7, kind: output, shape index: {}]
  %s8 = sld [smem:[#allocation0]]
  $region50: #{tpu_custom_call.1} parent=0
    _
  %s10 = ssub.s32 1, %s8
  %s11 = scalar_select 0, %s10, %s8
  $region1: #{tpu_custom_call.1} parent=0
    #allocation2 [shape = 'u8[8192]{0}', space=vmem, size = 0x2000, scoped, tag = 'input window, operand 0, single buffered']
    #allocation3 [shape = 's32[1]{0}', space=sflag, size = 0x4, scoped, tag = 'scoped memory for tpu_custom_call.1']
    #allocation4 [shape = 's32[1]{0}', space=sflag, size = 0x4, scoped, tag = 'scoped memory for tpu_custom_call.1']
    #allocation5 [shape = 'u8[65536]{0}', space=vmem, size = 0x10000, scoped, tag = 'input window, operand 1, single buffered']
    #allocation6 [shape = 's32[1]{0}', space=sflag, size = 0x4, scoped, tag = 'scoped memory for tpu_custom_call.1']
    #allocation7 [shape = 'u8[65536]{0}', space=vmem, size = 0x10000, scoped, tag = 'input window, operand 5, single buffered']
    #allocation8 [shape = 'u8[8192]{0}', space=vmem, size = 0x2000, scoped, tag = 'output window, operand 0, single buffered']
    %12 = vsyncpa [#allocation3], 0
    %13 = vsyncpa [#allocation6], 0
    %14 = vsyncpa [#allocation4], 0
    // Predicated region
    $region2: #{tpu_custom_call.1} parent=1 // pred_check
      _
    $region3: #{tpu_custom_call.1} parent=1 // pred_check_branch
      %16 = sbr.rel (0) target = $region5
    $region4: #{tpu_custom_call.1} parent=1 // pred_region
      %18 = vsyncadd [#allocation3], 0
      %s19 = sshll.u32 %s0, 4
      %s20 = int_to_ptr.hbm [resolvable:$true] %s19
      %s21 = sshll.u32 [#allocation2], 4
      %s22 = int_to_ptr.vmem [resolvable:$true] %s21
      %27 = dma.hbm_to_vmem [thread:$0]  %s20, 256, %s22, [#allocation3], 128, 128, 8
    $region5: #{tpu_custom_call.1} parent=1 // pred_fallthru
      _
    // Predicated region
    $region6: #{tpu_custom_call.1} parent=1 // pred_check
      _
    $region7: #{tpu_custom_call.1} parent=1 // pred_check_branch
      %29 = sbr.rel (0) target = $region9
    $region8: #{tpu_custom_call.1} parent=1 // pred_region
      %31 = vsyncadd [#allocation6], 0
      %s32 = sshll.u32 %s1, 4
      %s33 = int_to_ptr.hbm [resolvable:$true] %s32
      %s34 = sshll.u32 [#allocation5], 4
      %s35 = int_to_ptr.vmem [resolvable:$true] %s34
      %40 = dma.hbm_to_vmem [thread:$0]  %s33, 2048, %s35, [#allocation6], 128, 128, 8
    $region9: #{tpu_custom_call.1} parent=1 // pred_fallthru
      _
    // Predicated region
    $region10: #{tpu_custom_call.1} parent=1 // pred_check
      _
    $region11: #{tpu_custom_call.1} parent=1 // pred_check_branch
      %42 = sbr.rel (0) target = $region13
    $region12: #{tpu_custom_call.1} parent=1 // pred_region
      _
    $region13: #{tpu_custom_call.1} parent=1 // pred_fallthru
      _
    // Predicated region
    $region14: #{tpu_custom_call.1} parent=1 // pred_check
      _
    $region15: #{tpu_custom_call.1} parent=1 // pred_check_branch
      %44 = sbr.rel (0) target = $region17
    $region16: #{tpu_custom_call.1} parent=1 // pred_region
      _
    $region17: #{tpu_custom_call.1} parent=1 // pred_fallthru
      _
    // Predicated region
    $region18: #{tpu_custom_call.1} parent=1 // pred_check
      _
    $region19: #{tpu_custom_call.1} parent=1 // pred_check_branch
      %46 = sbr.rel (0) target = $region21
    $region20: #{tpu_custom_call.1} parent=1 // pred_region
      _
    $region21: #{tpu_custom_call.1} parent=1 // pred_fallthru
      _
    // Predicated region
    $region22: #{tpu_custom_call.1} parent=1 // pred_check
      _
    $region23: #{tpu_custom_call.1} parent=1 // pred_check_branch
      %48 = sbr.rel (0) target = $region25
    $region24: #{tpu_custom_call.1} parent=1 // pred_region
      %50 = vsyncadd [#allocation6], 0
      %s51 = sshll.u32 %s5, 4
      %s52 = int_to_ptr.hbm [resolvable:$true] %s51
      %s53 = sshll.u32 [#allocation7], 4
      %s54 = int_to_ptr.vmem [resolvable:$true] %s53
      %59 = dma.hbm_to_vmem [thread:$0]  %s52, 2048, %s54, [#allocation6], 128, 128, 8
    $region25: #{tpu_custom_call.1} parent=1 // pred_fallthru
      _
    // Predicated region
    $region26: #{tpu_custom_call.1} parent=1 // pred_check
      _
    $region27: #{tpu_custom_call.1} parent=1 // pred_check_branch
      %61 = sbr.rel (0) target = $region29
    $region28: #{tpu_custom_call.1} parent=1 // pred_region
      _
    $region29: #{tpu_custom_call.1} parent=1 // pred_fallthru
      _
    // Predicated region
    $region30: #{tpu_custom_call.1} parent=1 // pred_check
      _
    $region31: #{tpu_custom_call.1} parent=1 // pred_check_branch
      %63 = sbr.rel (0) target = $region33
    $region32: #{tpu_custom_call.1} parent=1 // pred_region
      %65 = dma.done [#allocation3], 256
    $region33: #{tpu_custom_call.1} parent=1 // pred_fallthru
      _
    // Predicated region
    $region34: #{tpu_custom_call.1} parent=1 // pred_check
      _
    $region35: #{tpu_custom_call.1} parent=1 // pred_check_branch
      %67 = sbr.rel (0) target = $region37
    $region36: #{tpu_custom_call.1} parent=1 // pred_region
      %69 = dma.done [#allocation6], 2048
    $region37: #{tpu_custom_call.1} parent=1 // pred_fallthru
      _
    // Predicated region
    $region38: #{tpu_custom_call.1} parent=1 // pred_check
      _
    $region39: #{tpu_custom_call.1} parent=1 // pred_check_branch
      %71 = sbr.rel (0) target = $region41
    $region40: #{tpu_custom_call.1} parent=1 // pred_region
      %73 = dma.done [#allocation6], 2048
    $region41: #{tpu_custom_call.1} parent=1 // pred_fallthru
      _
    %v74 = vld [vmem:[#allocation2] sm:$0xff]
    %v75 = vld [vmem:[#allocation2 + $0x8] sm:$0xff]
    %v76 = vld [vmem:[#allocation5] sm:$0xff]
    %v77 = vld [vmem:[#allocation5 + $0x8] sm:$0xff]
    %v78 = vld [vmem:[#allocation5 + $0x10] sm:$0xff]
    %v79 = vld [vmem:[#allocation5 + $0x18] sm:$0xff]
    %v80 = vld [vmem:[#allocation5 + $0x20] sm:$0xff]
    %v81 = vld [vmem:[#allocation5 + $0x28] sm:$0xff]
    %v82 = vld [vmem:[#allocation5 + $0x30] sm:$0xff]
    %v83 = vld [vmem:[#allocation5 + $0x38] sm:$0xff]
    %v84 = vld [vmem:[#allocation5 + $0x40] sm:$0xff]
    %v85 = vld [vmem:[#allocation5 + $0x48] sm:$0xff]
    %v86 = vld [vmem:[#allocation5 + $0x50] sm:$0xff]
    %v87 = vld [vmem:[#allocation5 + $0x58] sm:$0xff]
    %v88 = vld [vmem:[#allocation5 + $0x60] sm:$0xff]
    %v89 = vld [vmem:[#allocation5 + $0x68] sm:$0xff]
    %v90 = vld [vmem:[#allocation5 + $0x70] sm:$0xff]
    %v91 = vld [vmem:[#allocation5 + $0x78] sm:$0xff]
    %v92 = vld [vmem:[%s2] sm:$0x1]
    %v94 = vperm.slane %v92, 0
    %96 = vmatpush.msra.mxu0 %v91
    %97 = vmatpush.msra.mxu0 %v90
    %98 = vmatpush.msra.mxu0 %v89
    %99 = vmatpush.msra.mxu0 %v88
    %100 = vmatpush.msra.mxu0 %v87
    %101 = vmatpush.msra.mxu0 %v86
    %102 = vmatpush.msra.mxu0 %v85
    %103 = vmatpush.msra.mxu0 %v84
    %104 = vmatpush.msra.mxu0 %v83
    %105 = vmatpush.msra.mxu0 %v82
    %106 = vmatpush.msra.mxu0 %v81
    %107 = vmatpush.msra.mxu0 %v80
    %108 = vmatpush.msra.mxu0 %v79
    %109 = vmatpush.msra.mxu0 %v78
    %110 = vmatpush.msra.mxu0 %v77
    %111 = vmatpush.msra.mxu0 %v76
    %112 = vmatmul.f32.gmra.mxu0 %v74
    %v113 = vpop.f32.mrf.mxu0
    %v114 = vadd.f32 %v94, %v113
    %115 = vmatmul.f32.gmra.mxu0 %v75
    %v116 = vpop.f32.mrf.mxu0
    %v117 = vadd.f32 %v94, %v116
    %118 = vdwg.mxu0
    %v119 = vmul.f32 %v114, 0.5
    %v120 = vmul.f32 %v117, 0.5
    %v121 = vmul.f32 %v114, 0.70710677
    %v122 = vmul.f32 %v117, 0.70710677
    %v123 = vmul.f32 %v121, %v121
    %v124 = vmin.f32 16.0, %v123
    %v125 = vmul.f32 %v124, 2.1237322e-06
    %v126 = vadd.f32 %v125, 0.00028619796
    %v127 = vmul.f32 %v124, %v126
    %v128 = vadd.f32 %v127, 0.0036580483
    %v129 = vmul.f32 %v124, %v128
    %v130 = vadd.f32 %v129, 0.05243302
    %v131 = vmul.f32 %v124, %v130
    %v132 = vadd.f32 %v131, 0.18741608
    %v133 = vmul.f32 %v124, %v132
    %v134 = vadd.f32 %v133, 1.1283791
    %v135 = vmul.f32 %v121, %v134
    %v136 = vmul.f32 %v124, 3.8918573e-05
    %v137 = vadd.f32 %v136, 0.001143296
    %v138 = vmul.f32 %v124, %v137
    %v139 = vadd.f32 %v138, 0.014752088
    %v140 = vmul.f32 %v124, %v139
    %v141 = vadd.f32 %v140, 0.112945676
    %v142 = vmul.f32 %v124, %v141
    %v143 = vadd.f32 %v142, 0.4994258
    %v144 = vmul.f32 %v124, %v143
    %v145 = vadd.f32 %v144, 1.0
    %v146 = vrcp.pop %v145
    %v147 = vmul.f32 %v145, %v146
    %v148 = vsub.f32 1.0, %v147
    %v149 = vmul.f32 %v146, %v148
    %v150 = vadd.f32 %v146, %v149
    %vm151 = vweird.f32 %v145
    %vm152 = vweird.f32 %v146
    %vm153 = vmor %vm151, %vm152
    %v154 = vsel %vm153, %v146, %v150
    %v155 = vand.u32 2147483647, %v145
    %vm156 = vcmp.eq.f32.partialorder %v155, 8.507059e+37
    %v157 = vand.u32 %v145, 2147483648
    %v158 = vor.u32 1.1754944e-38, %v157
    %v159 = vsel %vm156, %v158, %v154
    %v160 = vmul.f32 %v135, %v159
    %v161 = vmin.f32 %v160, 1.0
    %v162 = vmax.f32 %v161, -1.0
    %v163 = vmul.f32 %v122, %v122
    %v164 = vmin.f32 16.0, %v163
    %v165 = vmul.f32 %v164, 2.1237322e-06
    %v166 = vadd.f32 %v165, 0.00028619796
    %v167 = vmul.f32 %v164, %v166
    %v168 = vadd.f32 %v167, 0.0036580483
    %v169 = vmul.f32 %v164, %v168
    %v170 = vadd.f32 %v169, 0.05243302
    %v171 = vmul.f32 %v164, %v170
    %v172 = vadd.f32 %v171, 0.18741608
    %v173 = vmul.f32 %v164, %v172
    %v174 = vadd.f32 %v173, 1.1283791
    %v175 = vmul.f32 %v122, %v174
    %v176 = vmul.f32 %v164, 3.8918573e-05
    %v177 = vadd.f32 %v176, 0.001143296
    %v178 = vmul.f32 %v164, %v177
    %v179 = vadd.f32 %v178, 0.014752088
    %v180 = vmul.f32 %v164, %v179
    %v181 = vadd.f32 %v180, 0.112945676
    %v182 = vmul.f32 %v164, %v181
    %v183 = vadd.f32 %v182, 0.4994258
    %v184 = vmul.f32 %v164, %v183
    %v185 = vadd.f32 %v184, 1.0
    %v186 = vrcp.pop %v185
    %v187 = vmul.f32 %v185, %v186
    %v188 = vsub.f32 1.0, %v187
    %v189 = vmul.f32 %v186, %v188
    %v190 = vadd.f32 %v186, %v189
    %vm191 = vweird.f32 %v185
    %vm192 = vweird.f32 %v186
    %vm193 = vmor %vm191, %vm192
    %v194 = vsel %vm193, %v186, %v190
    %v195 = vand.u32 2147483647, %v185
    %vm196 = vcmp.eq.f32.partialorder %v195, 8.507059e+37
    %v197 = vand.u32 %v185, 2147483648
    %v198 = vor.u32 1.1754944e-38, %v197
    %v199 = vsel %vm196, %v198, %v194
    %v200 = vmul.f32 %v175, %v199
    %v201 = vmin.f32 %v200, 1.0
    %v202 = vmax.f32 %v201, -1.0
    %v203 = vadd.f32 %v162, 1.0
    %v204 = vadd.f32 %v202, 1.0
    %v205 = vmul.f32 %v119, %v203
    %v206 = vmul.f32 %v120, %v204
    %207 = vadd.xlane.f32.xlu0 %v205
    %v208 = vpop.xlane.xlu0 %207
    %209 = vadd.xlane.f32.xlu0 %v206
    %v210 = vpop.xlane.xlu0 %209
    %v211 = vmul.f32 %v208, 0.015625
    %v212 = vmul.f32 %v210, 0.015625
    %v213 = vsub.f32 %v205, %v211
    %v214 = vsub.f32 %v206, %v212
    %v215 = vlaneseq
    %v216 = vand.u32 %v215, 127
    %vm217 = vcmp.lt.s32.totalorder %v216, 64
    %v218 = vsel %vm217, %v213, 0.0
    %v219 = vsel %vm217, %v214, 0.0
    %v220 = vmul.f32 %v218, %v218
    %v221 = vmul.f32 %v219, %v219
    %222 = vadd.xlane.f32.xlu0 %v220
    %v223 = vpop.xlane.xlu0 %222
    %224 = vadd.xlane.f32.xlu0 %v221
    %v225 = vpop.xlane.xlu0 %224
    %v226 = vmul.f32 %v223, 0.015625
    %v227 = vmul.f32 %v225, 0.015625
    %v228 = vadd.f32 %v226, 1e-12
    %v229 = vadd.f32 %v227, 1e-12
    %v230 = vrsqrt.pop %v228
    %v231 = vmul.f32 %v230, %v228
    %v232 = vmul.f32 %v231, %v230
    %v233 = vmul.f32 0.5, %v232
    %v234 = vsub.f32 1.5, %v233
    %v235 = vmul.f32 %v230, %v234
    %vm236 = vweird.f32 %v228
    %vm237 = vweird.f32 %v230
    %vm238 = vmor %vm236, %vm237
    %v239 = vsel %vm238, %v230, %v235
    %v240 = vrsqrt.pop %v229
    %v241 = vmul.f32 %v240, %v229
    %v242 = vmul.f32 %v241, %v240
    %v243 = vmul.f32 0.5, %v242
    %v244 = vsub.f32 1.5, %v243
    %v245 = vmul.f32 %v240, %v244
    %vm246 = vweird.f32 %v229
    %vm247 = vweird.f32 %v240
    %vm248 = vmor %vm246, %vm247
    %v249 = vsel %vm248, %v240, %v245
    %v250 = vmul.f32 %v218, %v239
    %v251 = vmul.f32 %v219, %v249
    %v252 = vld [vmem:[%s3] sm:$0x1]
    %v254 = vperm.slane %v252, 0
    %v256 = vmul.f32 %v250, %v254
    %v257 = vmul.f32 %v251, %v254
    %v258 = vld [vmem:[%s4] sm:$0x1]
    %v260 = vperm.slane %v258, 0
    %v262 = vadd.f32 %v256, %v260
    %v263 = vadd.f32 %v257, %v260
    %v264 = vld [vmem:[#allocation7] sm:$0xff]
    %v265 = vld [vmem:[#allocation7 + $0x8] sm:$0xff]
    %v266 = vld [vmem:[#allocation7 + $0x10] sm:$0xff]
    %v267 = vld [vmem:[#allocation7 + $0x18] sm:$0xff]
    %v268 = vld [vmem:[#allocation7 + $0x20] sm:$0xff]
    %v269 = vld [vmem:[#allocation7 + $0x28] sm:$0xff]
    %v270 = vld [vmem:[#allocation7 + $0x30] sm:$0xff]
    %v271 = vld [vmem:[#allocation7 + $0x38] sm:$0xff]
    %v272 = vld [vmem:[#allocation7 + $0x40] sm:$0xff]
    %v273 = vld [vmem:[#allocation7 + $0x48] sm:$0xff]
    %v274 = vld [vmem:[#allocation7 + $0x50] sm:$0xff]
    %v275 = vld [vmem:[#allocation7 + $0x58] sm:$0xff]
    %v276 = vld [vmem:[#allocation7 + $0x60] sm:$0xff]
    %v277 = vld [vmem:[#allocation7 + $0x68] sm:$0xff]
    %v278 = vld [vmem:[#allocation7 + $0x70] sm:$0xff]
    %v279 = vld [vmem:[#allocation7 + $0x78] sm:$0xff]
    %v280 = vld [vmem:[%s6] sm:$0x1]
    %v282 = vperm.slane %v280, 0
    %284 = vmatpush.msra.mxu0 %v279
    %285 = vmatpush.msra.mxu0 %v278
    %286 = vmatpush.msra.mxu0 %v277
    %287 = vmatpush.msra.mxu0 %v276
    %288 = vmatpush.msra.mxu0 %v275
    %289 = vmatpush.msra.mxu0 %v274
    %290 = vmatpush.msra.mxu0 %v273
    %291 = vmatpush.msra.mxu0 %v272
    %292 = vmatpush.msra.mxu0 %v271
    %293 = vmatpush.msra.mxu0 %v270
    %294 = vmatpush.msra.mxu0 %v269
    %295 = vmatpush.msra.mxu0 %v268
    %296 = vmatpush.msra.mxu0 %v267
    %297 = vmatpush.msra.mxu0 %v266
    %298 = vmatpush.msra.mxu0 %v265
    %299 = vmatpush.msra.mxu0 %v264
    %300 = vmatmul.f32.gmra.mxu0 %v262
    %v301 = vpop.f32.mrf.mxu0
    %v302 = vadd.f32 %v282, %v301
    %303 = vmatmul.f32.gmra.mxu0 %v263
    %v304 = vpop.f32.mrf.mxu0
    %v305 = vadd.f32 %v282, %v304
    %306 = vdwg.mxu0
    %307 = vst [vmem:[#allocation8] sm:$0xff] %v302
    %308 = vst [vmem:[#allocation8 + $0x8] sm:$0xff] %v305
    // Predicated region
    $region42: #{tpu_custom_call.1} parent=1 // pred_check
      _
    $region43: #{tpu_custom_call.1} parent=1 // pred_check_branch
      %310 = sbr.rel (0) target = $region45
    $region44: #{tpu_custom_call.1} parent=1 // pred_region
      %312 = vsyncadd [#allocation4], 0
      %s313 = sshll.u32 [#allocation8], 4
      %s314 = int_to_ptr.vmem [resolvable:$true] %s313
      %s315 = sshll.u32 %s7, 4
      %s316 = int_to_ptr.hbm [resolvable:$true] %s315
      %321 = dma.vmem_to_hbm [thread:$0]  %s314, 256, %s316, [#allocation4], 128, 128, 8
    $region45: #{tpu_custom_call.1} parent=1 // pred_fallthru
      _
    // Predicated region
    $region46: #{tpu_custom_call.1} parent=1 // pred_check
      _
    $region47: #{tpu_custom_call.1} parent=1 // pred_check_branch
      %323 = sbr.rel (0) target = $region49
    $region48: #{tpu_custom_call.1} parent=1 // pred_region
      %325 = dma.done [#allocation4], 256
    $region49: #{tpu_custom_call.1} parent=1 // pred_fallthru
      _
    %326 = vsyncpa [#allocation3], 1
    %327 = vsyncpa [#allocation6], 1
    %328 = vsyncpa [#allocation4], 1

</llo_original>
